<compile_context>
chip_gen: v7x
topology: tpu7x:2x2x1
jax: 0.10.0
libtpu: 0.0.40
codegen_flags: <defaults>
</compile_context>

<pallas_src>
import functools

import jax
import jax.numpy as jnp
from jax.experimental import pallas as pl
from jax.experimental.pallas import tpu as pltpu


def _gaussian_smearing_kernel(dist_ref, out_ref, *, start, delta, coeff):
    # dist_ref: (1, TILE_N) f32 VMEM   (distances on the lane axis)
    # out_ref:  (G, TILE_N)    VMEM    (gaussians on the sublane axis)
    g = out_ref.shape[0]
    # offset[g] = start + g * delta, built in-kernel (no second input stream).
    offs = start + delta * jax.lax.broadcasted_iota(
        jnp.int32, (g, 1), 0).astype(jnp.float32)          # (G, 1)
    d = dist_ref[...] - offs                                # -> (G, TILE_N)
    out_ref[...] = jnp.exp(coeff * (d * d)).astype(out_ref.dtype)


def _round_up(x, m):
    return ((x + m - 1) // m) * m


def gaussian_smearing_lane_dense(dist, *, start=0.0, stop=5.0,
                                 num_gaussians=50, tile_n=8192,
                                 out_dtype=jnp.float32):
    """Lane-dense GaussianSmearing kernel.

    dist: any-shape array (flattened, like dist.view(-1, 1) in PyTorch).
    Returns a (num_gaussians, N) array — transpose of the PyTorch layout —
    so that N (large) sits on lanes and stores are unmasked.
    """
    delta = (stop - start) / (num_gaussians - 1)
    coeff = -0.5 / (delta ** 2)

    d_row = dist.reshape(1, -1).astype(jnp.float32)         # (1, N) lane-major
    n = d_row.shape[1]

    # tile_n: multiple of 128 (unmasked lane-dense stores); cap so there are
    # at least two grid steps for mid/large N (v7x megacore sharding), and
    # never bigger than the padded array.
    n128 = _round_up(n, 128)
    two_step_cap = _round_up((n + 1) // 2, 128)
    tile_n = max(128, min(int(tile_n), two_step_cap, n128))
    grid = (pl.cdiv(n, tile_n),)

    kernel = functools.partial(
        _gaussian_smearing_kernel,
        start=float(start), delta=float(delta), coeff=float(coeff))

    out_bytes = jnp.dtype(out_dtype).itemsize
    cost = pl.CostEstimate(
        flops=3 * n * num_gaussians,
        transcendentals=n * num_gaussians,
        bytes_accessed=n * num_gaussians * out_bytes + 4 * n)

    return pl.pallas_call(
        kernel,
        out_shape=jax.ShapeDtypeStruct((num_gaussians, n), out_dtype),
        grid_spec=pltpu.PrefetchScalarGridSpec(
            num_scalar_prefetch=0,
            grid=grid,
            in_specs=[pl.BlockSpec((1, tile_n), lambda i: (0, i))],
            out_specs=pl.BlockSpec((num_gaussians, tile_n),
                                   lambda i: (0, i)),
        ),
        compiler_params=pltpu.CompilerParams(
            dimension_semantics=("parallel",)),
        cost_estimate=cost,
    )(d_row)


def gaussian_smearing(dist, *, start=0.0, stop=5.0, num_gaussians=50,
                      tile_n=8192, out_dtype=jnp.float32,
                      use_kernel=None, min_kernel_n=4096):
    """PyTorch-parity wrapper: returns (N, num_gaussians).

    Small N dispatches to the fused XLA expression (kernel dispatch overhead
    would dominate); large N runs the lane-dense Pallas kernel and exposes a
    logical transpose that XLA can fold into the downstream consumer.
    """
    n = dist.size
    if use_kernel is None:
        use_kernel = n >= min_kernel_n
    if not use_kernel:
        return gaussian_smearing_ref(
            dist, start=start, stop=stop,
            num_gaussians=num_gaussians).astype(out_dtype)
    out_gn = gaussian_smearing_lane_dense(
        dist, start=start, stop=stop, num_gaussians=num_gaussians,
        tile_n=tile_n, out_dtype=out_dtype)
    return out_gn.T


def gaussian_smearing_ref(dist, *, start=0.0, stop=5.0, num_gaussians=50):
    offset = jnp.linspace(start, stop, num_gaussians, dtype=jnp.float32)
    delta = (stop - start) / (num_gaussians - 1)
    coeff = -0.5 / (delta ** 2)
    d = dist.reshape(-1, 1).astype(jnp.float32) - offset.reshape(1, -1)
    return jnp.exp(coeff * d * d)


if __name__ == "__main__":
    key = jax.random.PRNGKey(0)
    k1, k2 = jax.random.split(key)

    # SchNet-like: 200 pairwise distances in [0, 5).
    dist = jax.random.uniform(k1, (200,), dtype=jnp.float32,
                              minval=0.0, maxval=5.0)
    ref = gaussian_smearing_ref(dist)

    # 1) Lane-dense kernel path (preferred layout for downstream fusion).
    out_gn = jax.block_until_ready(gaussian_smearing_lane_dense(dist))
    assert out_gn.shape == (50, 200), out_gn.shape
    assert jnp.allclose(out_gn.T, ref, atol=1e-5, rtol=1e-5), \
        float(jnp.max(jnp.abs(out_gn.T - ref)))

    # 2) PyTorch-parity wrapper forced through the kernel; non-flat input
    #    exercises the .view(-1, 1) semantics and the ragged last block.
    dist2 = jax.random.uniform(k2, (8, 25), dtype=jnp.float32,
                               minval=0.0, maxval=5.0)
    ref2 = gaussian_smearing_ref(dist2)
    out2 = jax.block_until_ready(gaussian_smearing(dist2, use_kernel=True))
    assert out2.shape == (200, 50), out2.shape
    assert jnp.allclose(out2, ref2, atol=1e-5, rtol=1e-5), \
        float(jnp.max(jnp.abs(out2 - ref2)))

    # 3) bf16 output path (halves HBM write traffic for bf16 consumers).
    out_bf = jax.block_until_ready(
        gaussian_smearing_lane_dense(dist, out_dtype=jnp.bfloat16))
    assert out_bf.dtype == jnp.bfloat16
    assert jnp.allclose(out_bf.astype(jnp.float32).T, ref, atol=3e-2), \
        float(jnp.max(jnp.abs(out_bf.astype(jnp.float32).T - ref)))

    # 4) Small-N dispatch (pure XLA) of the parity wrapper.
    out_small = jax.block_until_ready(gaussian_smearing(dist))
    assert out_small.shape == (200, 50), out_small.shape
    assert jnp.allclose(out_small, ref, atol=1e-5, rtol=1e-5)

    print("KERNEL_OK")
</pallas_src>

<mosaic_0001>
module attributes {stable_mosaic.version = 11 : i64} {
  func.func @_gaussian_smearing_kernel(%arg0: i32, %arg1: memref<1x128xf32, #tpu.memory_space<vmem>>, %arg2: memref<50x128xf32, #tpu.memory_space<vmem>>) attributes {dimension_semantics = [#tpu.dimension_semantics<parallel>], iteration_bounds = array<i64: 2>, scalar_prefetch = 0 : i64, scratch_operands = 0 : i64, tpu.core_type = #tpu.core_type<tc>, window_params = [{transform_indices = @transform_0, window_bounds = array<i64: 1, 128>}, {transform_indices = @transform_1, window_bounds = array<i64: 50, 128>}]} {
    %0 = tpu.iota {dimensions = array<i32: 0>} : vector<50x1xi32>
    %1 = arith.sitofp %0 : vector<50x1xi32> to vector<50x1xf32>
    %cst = arith.constant 0.10204082 : f32
    %2 = vector.broadcast %cst : f32 to vector<50x1xf32>
    %3 = arith.mulf %2, %1 : vector<50x1xf32>
    %cst_0 = arith.constant 0.000000e+00 : f32
    %4 = vector.broadcast %cst_0 : f32 to vector<50x1xf32>
    %5 = arith.addf %4, %3 : vector<50x1xf32>
    %c0 = arith.constant 0 : index
    %c0_1 = arith.constant 0 : index
    %6 = vector.load %arg1[%c0, %c0_1] : memref<1x128xf32, #tpu.memory_space<vmem>>, vector<1x128xf32>
    %7 = vector.broadcast %6 : vector<1x128xf32> to vector<50x128xf32>
    %8 = vector.broadcast %5 : vector<50x1xf32> to vector<50x128xf32>
    %9 = arith.subf %7, %8 : vector<50x128xf32>
    %10 = arith.mulf %9, %9 : vector<50x128xf32>
    %cst_2 = arith.constant -4.802000e+01 : f32
    %11 = vector.broadcast %cst_2 : f32 to vector<50x128xf32>
    %12 = arith.mulf %11, %10 : vector<50x128xf32>
    %13 = math.exp %12 : vector<50x128xf32>
    %c0_3 = arith.constant 0 : index
    %c0_4 = arith.constant 0 : index
    %14 = vector.load %arg2[%c0_3, %c0_4] : memref<50x128xf32, #tpu.memory_space<vmem>>, vector<50x128xf32>
    tpu.vector_store %arg2[%c0_3, %c0_4], %13 {strides = array<i32>} : memref<50x128xf32, #tpu.memory_space<vmem>>, vector<50x128xf32>,
    return
  }
  func.func @transform_0(%arg0: i32) -> (i32, i32) {
    %c0_i32 = arith.constant 0 : i32
    %c0_i32_0 = arith.constant 0 : i32
    return %c0_i32, %arg0 : i32, i32
  }
  func.func @transform_1(%arg0: i32) -> (i32, i32) {
    %c0_i32 = arith.constant 0 : i32
    %c0_i32_0 = arith.constant 0 : i32
    return %c0_i32, %arg0 : i32, i32
  }
}

</mosaic_0001>

<llo_original>
// kernel: tpu_custom_call.1
$region0: #{tpu_custom_call.1}
  #allocation0 [shape = 'u32[]', space=smem, size = 0x4, offset = 0x4, fixed_abs, tag = 'smem constant byte address 0x4 - core index']
  #allocation1 [shape = 'u32[144,128]{1,0:T(1,128)}', space=vmem, size = 0x12000, scoped, tag = 'internal scratch']
  %s0 = inlined_call_operand.hbm [shape: f32[1,200], index: 0, kind: input, shape index: {}]
  %s1 = inlined_call_operand.hbm [shape: f32[50,200], index: 1, kind: output, shape index: {}]
  %s2 = sld [smem:[#allocation0]]
  $region41: #{tpu_custom_call.1} parent=0
    _
  %s4 = ssub.s32 1, %s2
  %s5 = scalar_select 0, %s4, %s2
  $region1: #{tpu_custom_call.1} parent=0
    #allocation2 [shape = 'u8[1024]{0}', space=vmem, size = 0x400, scoped, tag = 'input window, operand 0']
    #allocation3 [shape = 's32[2]{0}', space=sflag, size = 0x8, scoped, tag = 'scoped memory for tpu_custom_call.1']
    #allocation4 [shape = 's32[2]{0}', space=sflag, size = 0x8, scoped, tag = 'scoped memory for tpu_custom_call.1']
    #allocation5 [shape = 'u8[57344]{0}', space=vmem, size = 0xe000, scoped, tag = 'output window, operand 0']
    %6 = vsyncpa [#allocation3], 0
    %s7 = scalar_lea.sflag [#allocation3], 1
    %8 = vsyncpa %s7, 0
    %9 = vsyncpa [#allocation4], 0
    %s10 = scalar_lea.sflag [#allocation4], 1
    %11 = vsyncpa %s10, 0
    loop: start=0, step=1, limit=4
    $region2: #{tpu_custom_call.1} parent=1 // loop_pre_header
      _
    $region3: #{tpu_custom_call.1} parent=1 // loop_header
      %s13 = sphi 0, %s17
      %p14 = scmp.ge.s32.totalorder %s13, 4
      %s23 = sphi 0, %s25
      %s26 = sphi 0, %s23
      %s27 = sphi 0, %s26
      %s43 = sphi 0, %s27
      %s49 = sphi 0, %s51
      %s52 = sphi 0, %s49
      %s53 = sphi 0, %s52
      %s69 = sphi 0, %s53
    $region4: #{tpu_custom_call.1} parent=1 // loop_header_branch
      %16 = sbr.rel (%p14) target = $region8
    $region5: #{tpu_custom_call.1} parent=1 // loop_body
      %s18 = ssub.s32 %s13, 1
      %s19 = ssub.s32 %s13, 2
      %s20 = sadd.s32 %s13, 1
      %s21 = ssub.s32 %s13, %s20
      %p22 = scmp.eq.s32.totalorder %s21, 0
      %s24 = sadd.s32 %s23, 1
      %s25 = scalar_select %p22, %s23, %s24
      %p28 = pneg %p22
      %p29 = scmp.eq.s32.totalorder %s13, 1
      %p30 = por %p28, %p29
      %p31 = scmp.ne.s32.totalorder %s23, %s26
      %p32 = scmp.eq.s32.totalorder %s13, 0
      %p33 = por %p31, %p32
      %p34 = scmp.ne.s32.totalorder %s23, %s26
      %p35 = scmp.eq.s32.totalorder %s18, 1
      %p36 = por %p34, %p35
      %p37 = scmp.ne.s32.totalorder %s26, %s27
      %p38 = scmp.eq.s32.totalorder %s18, 0
      %p39 = por %p37, %p38
      %p40 = scmp.ne.s32.totalorder %s26, %s27
      %p41 = scmp.eq.s32.totalorder %s19, 1
      %p42 = por %p40, %p41
      %p44 = scmp.ne.s32.totalorder %s27, %s43
      %p45 = scmp.eq.s32.totalorder %s19, 0
      %p46 = por %p44, %p45
      %s47 = ssub.s32 %s13, %s20
      %p48 = scmp.eq.s32.totalorder %s47, 0
      %s50 = sadd.s32 %s49, 1
      %s51 = scalar_select %p48, %s49, %s50
      %p54 = pneg %p48
      %p55 = scmp.eq.s32.totalorder %s13, 1
      %p56 = por %p54, %p55
      %p57 = scmp.ne.s32.totalorder %s49, %s52
      %p58 = scmp.eq.s32.totalorder %s13, 0
      %p59 = por %p57, %p58
      %p60 = scmp.ne.s32.totalorder %s49, %s52
      %p61 = scmp.eq.s32.totalorder %s18, 1
      %p62 = por %p60, %p61
      %p63 = scmp.ne.s32.totalorder %s52, %s53
      %p64 = scmp.eq.s32.totalorder %s18, 0
      %p65 = por %p63, %p64
      %p66 = scmp.ne.s32.totalorder %s52, %s53
      %p67 = scmp.eq.s32.totalorder %s19, 1
      %p68 = por %p66, %p67
      %p70 = scmp.ne.s32.totalorder %s53, %s69
      %p71 = scmp.eq.s32.totalorder %s19, 0
      %p72 = por %p70, %p71
      %p73 = scmp.le.s32.totalorder 1, %s13
      %p74 = scmp.lt.s32.totalorder %s13, 3
      %p75 = pnand %p73, %p74
      %p76 = pneg %p75
      // Predicated region
      $region9: #{tpu_custom_call.1} parent=5 // pred_check
        _
      $region10: #{tpu_custom_call.1} parent=5 // pred_check_branch
        %78 = sbr.rel (%p75) target = $region12
      $region11: #{tpu_custom_call.1} parent=5 // pred_region
        %s79 = ssub.s32 %s13, 1
      $region12: #{tpu_custom_call.1} parent=5 // pred_fallthru
        _
      %p80 = scmp.lt.s32.totalorder %s13, 2
      // Predicated region
      $region13: #{tpu_custom_call.1} parent=5 // pred_check
        %p81 = pneg %p80
      $region14: #{tpu_custom_call.1} parent=5 // pred_check_branch
        %83 = sbr.rel (%p81) target = $region16
      $region15: #{tpu_custom_call.1} parent=5 // pred_region
        // Predicated region
        $region17: #{tpu_custom_call.1} parent=15 // pred_check
          %p84 = pneg %p33
        $region18: #{tpu_custom_call.1} parent=15 // pred_check_branch
          %86 = sbr.rel (%p84) target = $region20
        $region19: #{tpu_custom_call.1} parent=15 // pred_region
          %s87 = sand.u32 %s23, 1
          %s88 = scalar_lea.sflag [#allocation3], %s87
          %s89 = sand.u32 %s23, 1
          %s90 = scalar_lea.vmem [#allocation2], %s89
          %s92 = ssub.s32 16, 16
          %93 = vsyncadd %s88, %s92
          %s94 = smul.addr %s13, 16
          %s95 = scalar_lea.hbm %s0, %s94
          %s97 = sshll.u32 %s90, 4
          %s98 = int_to_ptr.vmem [resolvable:$true] %s97
          %100 = dma.hbm_to_vmem [thread:$0]  %s95, 16, %s98, %s88
        $region20: #{tpu_custom_call.1} parent=15 // pred_fallthru
          _
      $region16: #{tpu_custom_call.1} parent=5 // pred_fallthru
        _
      %p101 = scmp.le.s32.totalorder 1, %s13
      %p102 = scmp.lt.s32.totalorder %s13, 3
      %p103 = pnand %p101, %p102
      %p104 = pneg %p103
      // Predicated region
      $region21: #{tpu_custom_call.1} parent=5 // pred_check
        _
      $region22: #{tpu_custom_call.1} parent=5 // pred_check_branch
        %106 = sbr.rel (%p103) target = $region24
      $region23: #{tpu_custom_call.1} parent=5 // pred_region
        %s107 = ssub.s32 %s13, 1
        %s108 = sand.u32 %s26, 1
        %s109 = scalar_lea.sflag [#allocation3], %s108
        %s110 = sand.u32 %s26, 1
        %s111 = scalar_lea.vmem [#allocation2], %s110
        // Predicated region
        $region25: #{tpu_custom_call.1} parent=23 // pred_check
          %p112 = pneg %p39
        $region26: #{tpu_custom_call.1} parent=23 // pred_check_branch
          %114 = sbr.rel (%p112) target = $region28
        $region27: #{tpu_custom_call.1} parent=23 // pred_region
          %115 = dma.done %s109, 16
        $region28: #{tpu_custom_call.1} parent=23 // pred_fallthru
          _
        %s116 = sand.u32 %s26, 1
        %s117 = scalar_lea.sflag [#allocation3], %s116
        %s118 = sand.u32 %s26, 1
        %s119 = scalar_lea.vmem [#allocation2], %s118
        %p120 = pneg %p39
        %p121 = pneg %p36
        %p122 = pneg %p65
        %p123 = pneg %p62
        %s124 = sand.u32 %s52, 1
        %s125 = scalar_lea.sflag [#allocation4], %s124
        %s126 = sand.u32 %s52, 1
        %s127 = smul.addr %s126, 56
        %s128 = scalar_lea.vmem [#allocation5], %s127
        %v129 = vlaneseq
        %v130 = vshrl.u32 %v129, 7
        %v131 = vadd.s32 %v130, 8
        %v132 = vadd.s32 %v130, 16
        %v133 = vadd.s32 %v130, 24
        %v134 = vadd.s32 %v130, 32
        %v135 = vadd.s32 %v130, 40
        %v136 = vadd.s32 %v130, 48
        %v137 = vcvt.s32.f32 %v130
        %v138 = vcvt.s32.f32 %v131
        %v139 = vcvt.s32.f32 %v132
        %v140 = vcvt.s32.f32 %v133
        %v141 = vcvt.s32.f32 %v134
        %v142 = vcvt.s32.f32 %v135
        %v143 = vcvt.s32.f32 %v136
        %v144 = vmul.f32 %v137, 0.10204082
        %v145 = vmul.f32 %v138, 0.10204082
        %v146 = vmul.f32 %v139, 0.10204082
        %v147 = vmul.f32 %v140, 0.10204082
        %v148 = vmul.f32 %v141, 0.10204082
        %v149 = vmul.f32 %v142, 0.10204082
        %v150 = vmul.f32 %v143, 0.10204082
        %v151 = vadd.f32 %v144, 0.0
        %v152 = vadd.f32 %v145, 0.0
        %v153 = vadd.f32 %v146, 0.0
        %v154 = vadd.f32 %v147, 0.0
        %v155 = vadd.f32 %v148, 0.0
        %v156 = vadd.f32 %v149, 0.0
        %v157 = vadd.f32 %v150, 0.0
        %v158 = vld [vmem:[%s111] sm:$0x1]
        %v160 = vlaneseq
        %v161 = vshrl.u32 %v160, 7
        %v162 = vsub.s32 0, %v161
        %v163 = vrot.slane %v158, %v162
        %v165 = vsub.f32 %v163, %v151
        %v166 = vsub.f32 %v163, %v152
        %v167 = vsub.f32 %v163, %v153
        %v168 = vsub.f32 %v163, %v154
        %v169 = vsub.f32 %v163, %v155
        %v170 = vsub.f32 %v163, %v156
        %v171 = vsub.f32 %v163, %v157
        %v172 = vmul.f32 %v165, %v165
        %v173 = vmul.f32 %v166, %v166
        %v174 = vmul.f32 %v167, %v167
        %v175 = vmul.f32 %v168, %v168
        %v176 = vmul.f32 %v169, %v169
        %v177 = vmul.f32 %v170, %v170
        %v178 = vmul.f32 %v171, %v171
        %v179 = vmul.f32 %v172, -48.02
        %v180 = vmul.f32 %v173, -48.02
        %v181 = vmul.f32 %v174, -48.02
        %v182 = vmul.f32 %v175, -48.02
        %v183 = vmul.f32 %v176, -48.02
        %v184 = vmul.f32 %v177, -48.02
        %v185 = vmul.f32 %v178, -48.02
        %v186 = vmul.f32 %v179, 1.442695
        %v187 = vpow.pop %v186
        %v188 = vmul.f32 %v180, 1.442695
        %v189 = vpow.pop %v188
        %v190 = vmul.f32 %v181, 1.442695
        %v191 = vpow.pop %v190
        %v192 = vmul.f32 %v182, 1.442695
        %v193 = vpow.pop %v192
        %v194 = vmul.f32 %v183, 1.442695
        %v195 = vpow.pop %v194
        %v196 = vmul.f32 %v184, 1.442695
        %v197 = vpow.pop %v196
        %v198 = vmul.f32 %v185, 1.442695
        %v199 = vpow.pop %v198
        %200 = vst [vmem:[%s128] sm:$0xff] %v187
        %201 = vst [vmem:[%s128 + $0x8] sm:$0xff] %v189
        %202 = vst [vmem:[%s128 + $0x10] sm:$0xff] %v191
        %203 = vst [vmem:[%s128 + $0x18] sm:$0xff] %v193
        %204 = vst [vmem:[%s128 + $0x20] sm:$0xff] %v195
        %205 = vst [vmem:[%s128 + $0x28] sm:$0xff] %v197
        %206 = vst [vmem:[%s128 + $0x30] sm:$0x3] %v199
        %s207 = sand.u32 %s52, 1
        %s208 = scalar_lea.sflag [#allocation4], %s207
        %s209 = sand.u32 %s52, 1
        %s210 = smul.addr %s209, 56
        %s211 = scalar_lea.vmem [#allocation5], %s210
        // Predicated region
        $region29: #{tpu_custom_call.1} parent=23 // pred_check
          %p212 = pneg %p62
        $region30: #{tpu_custom_call.1} parent=23 // pred_check_branch
          %214 = sbr.rel (%p212) target = $region32
        $region31: #{tpu_custom_call.1} parent=23 // pred_region
          %s216 = ssub.s32 896, 896
          %217 = vsyncadd %s208, %s216
          %s218 = smul.addr %s18, 128
          %s219 = scalar_lea.hbm %s1, %s218
          %s220 = sshll.u32 %s211, 4
          %s221 = int_to_ptr.vmem [resolvable:$true] %s220
          %226 = dma.vmem_to_hbm [thread:$0]  %s221, 896, %s219, %s208, 128, 256, 8
        $region32: #{tpu_custom_call.1} parent=23 // pred_fallthru
          _
      $region24: #{tpu_custom_call.1} parent=5 // pred_fallthru
        _
      %p227 = scmp.le.s32.totalorder 2, %s13
      // Predicated region
      $region33: #{tpu_custom_call.1} parent=5 // pred_check
        %p228 = pneg %p227
      $region34: #{tpu_custom_call.1} parent=5 // pred_check_branch
        %230 = sbr.rel (%p228) target = $region36
      $region35: #{tpu_custom_call.1} parent=5 // pred_region
        %s231 = ssub.s32 %s13, 2
        // Predicated region
        $region37: #{tpu_custom_call.1} parent=35 // pred_check
          %p232 = pneg %p68
        $region38: #{tpu_custom_call.1} parent=35 // pred_check_branch
          %234 = sbr.rel (%p232) target = $region40
        $region39: #{tpu_custom_call.1} parent=35 // pred_region
          %s235 = sand.u32 %s53, 1
          %s236 = scalar_lea.sflag [#allocation4], %s235
          %s237 = sand.u32 %s53, 1
          %s238 = smul.addr %s237, 56
          %s239 = scalar_lea.vmem [#allocation5], %s238
          %240 = dma.done %s236, 896
        $region40: #{tpu_custom_call.1} parent=35 // pred_fallthru
          _
      $region36: #{tpu_custom_call.1} parent=5 // pred_fallthru
        _
    $region6: #{tpu_custom_call.1} parent=1 // loop_footer
      %s17 = sadd.s32 1, %s13
    $region7: #{tpu_custom_call.1} parent=1 // loop_footer_branch
      %12 = sbr.rel target = $region3
    $region8: #{tpu_custom_call.1} parent=1 // loop_exit
      _
    %241 = vsyncpa [#allocation3], 1
    %s242 = scalar_lea.sflag [#allocation3], 1
    %243 = vsyncpa %s242, 1
    %244 = vsyncpa [#allocation4], 1
    %s245 = scalar_lea.sflag [#allocation4], 1
    %246 = vsyncpa %s245, 1

</llo_original>
